<compile_context>
chip_gen: v6e
topology: v6e:2x2x1
jax: 0.10.0
libtpu: 0.0.40
codegen_flags: <defaults>
</compile_context>

<pallas_src>
import functools

import numpy as np
import jax
import jax.numpy as jnp
from jax.experimental import pallas as pl
from jax.experimental.pallas import tpu as pltpu

OUT_PAD = 128   # lane-dense padded output width; member m's prediction -> column m


def _round_up(v, m):
    return ((v + m - 1) // m) * m


# --------------------------------- kernel ----------------------------------

def fused_ensemble_kernel(x_ref,
                          w1_ref, b1_ref,
                          w2_ref, b2_ref,
                          w3_ref, b3_ref,
                          w4_ref, b4_ref,
                          o_ref):
    """Whole-ensemble forward in one step.

    Member weights are stacked block-diagonally (hidden axis = M * H_max), BN
    is pre-folded into the following Linear (eval mode), Dropout is identity,
    so the ensemble is exactly 4 matmuls + 3 ReLUs.
    """
    x = x_ref[...]                                                    # (Bt, F)
    h = jnp.dot(x, w1_ref[...], preferred_element_type=jnp.float32) + b1_ref[...]
    h = jnp.maximum(h, 0.0)
    h = jnp.dot(h, w2_ref[...], preferred_element_type=jnp.float32) + b2_ref[...]
    h = jnp.maximum(h, 0.0)
    h = jnp.dot(h, w3_ref[...], preferred_element_type=jnp.float32) + b3_ref[...]
    h = jnp.maximum(h, 0.0)
    out = jnp.dot(h, w4_ref[...], preferred_element_type=jnp.float32) + b4_ref[...]
    o_ref[...] = out.astype(o_ref.dtype)                              # (Bt, OUT_PAD)


def run_ensemble_mlp(x, params, *, block_b=1024):
    """x: (B, F) shared feature matrix; params: 8 block-diag stacked arrays."""
    B, F = x.shape
    if B <= block_b:
        bb, Bp = B, B
    else:
        bb = block_b
        Bp = _round_up(B, bb)
        x = jnp.pad(x, ((0, Bp - B), (0, 0)))
    nb = Bp // bb

    in_specs = [pl.BlockSpec((bb, F), lambda i: (i, 0))]
    in_specs += [pl.BlockSpec(p.shape, lambda i: (0, 0)) for p in params]  # untiled
    out_specs = pl.BlockSpec((bb, OUT_PAD), lambda i: (i, 0))

    mh = params[0].shape[-1]
    flops = int(2 * Bp * (F * mh + 2 * mh * mh + mh * OUT_PAD))
    bytes_accessed = int(4 * (Bp * F + sum(int(p.size) for p in params) + Bp * OUT_PAD))

    out = pl.pallas_call(
        fused_ensemble_kernel,
        out_shape=jax.ShapeDtypeStruct((Bp, OUT_PAD), jnp.float32),
        grid=(nb,),
        in_specs=in_specs,
        out_specs=out_specs,
        compiler_params=pltpu.CompilerParams(
            dimension_semantics=("parallel",) if nb > 1 else ("arbitrary",)),
        cost_estimate=pl.CostEstimate(
            flops=flops, transcendentals=0, bytes_accessed=bytes_accessed),
    )(x, *params)
    return out[:B]


# ------------------------- deterministic parameter init -------------------------

def _linear_init(key, fan_in, fan_out):
    """PyTorch nn.Linear default init: U(-1/sqrt(fan_in), 1/sqrt(fan_in))."""
    k_w, k_b = jax.random.split(key)
    bound = 1.0 / float(fan_in) ** 0.5
    w = jax.random.uniform(k_w, (fan_in, fan_out), jnp.float32, -bound, bound)
    b = jax.random.uniform(k_b, (1, fan_out), jnp.float32, -bound, bound)
    return w, b


def _bn_folded_init(key, dim, eps=1e-5):
    """BatchNorm1d eval-mode params folded to per-feature scale/shift (exact)."""
    kg, kb, km, kv = jax.random.split(key, 4)
    gamma = 1.0 + 0.1 * jax.random.normal(kg, (1, dim), jnp.float32)
    beta = 0.1 * jax.random.normal(kb, (1, dim), jnp.float32)
    running_mean = 0.1 * jax.random.normal(km, (1, dim), jnp.float32)
    running_var = jnp.abs(1.0 + 0.1 * jax.random.normal(kv, (1, dim), jnp.float32))
    scale = gamma / jnp.sqrt(running_var + eps)
    shift = beta - running_mean * scale
    return scale, shift


def init_ensemble_params(key, emb_dims, number_of_dims, hidden_dims, out_dim=1):
    n_embs = sum(y for _, y in emb_dims)
    keys = jax.random.split(key, 1 + len(hidden_dims))

    # nn.Embedding default init: N(0, 1)
    emb_keys = jax.random.split(keys[0], len(emb_dims))
    emb_tables = [jax.random.normal(k, (n, d), jnp.float32)
                  for k, (n, d) in zip(emb_keys, emb_dims)]

    mlp_params = []
    for i, hdim in enumerate(hidden_dims):
        in_dim = number_of_dims[i] + n_embs
        mk = jax.random.split(keys[1 + i], 7)
        w1, b1 = _linear_init(mk[0], in_dim, hdim)
        s1, t1 = _bn_folded_init(mk[1], hdim)
        w2, b2 = _linear_init(mk[2], hdim, hdim)
        s2, t2 = _bn_folded_init(mk[3], hdim)
        w3, b3 = _linear_init(mk[4], hdim, hdim)
        s3, t3 = _bn_folded_init(mk[5], hdim)
        w4, b4 = _linear_init(mk[6], hdim, out_dim)
        mlp_params.append((w1, b1, s1, t1,
                           w2, b2, s2, t2,
                           w3, b3, s3, t3,
                           w4, b4))
    return emb_tables, mlp_params


# ---------------- one-time host-side folding / stacking (outside jit) ----------------

def build_combined_embedding(emb_tables):
    """Concatenate per-column tables into one block-diagonal lookup table.

    Row block k = table k (indices offset by cumulative cardinality), column
    block k = its emb_dim.  One jnp.take + sum over the categorical axis then
    reproduces per-column lookup + concat exactly.
    """
    cards = [int(t.shape[0]) for t in emb_tables]
    dims = [int(t.shape[1]) for t in emb_tables]
    combined = np.zeros((sum(cards), sum(dims)), np.float32)
    row_offsets = []
    r = c = 0
    for t, card, d in zip(emb_tables, cards, dims):
        combined[r:r + card, c:c + d] = np.asarray(t)
        row_offsets.append(r)
        r += card
        c += d
    return jnp.asarray(combined), jnp.asarray(row_offsets, jnp.int32)


def build_stacked_params(mlp_params_raw, input_dims, n_cont_total, n_embs, max_hidden):
    """Fold BN into the following Linear, fold each member's column selection
    into its W1, and stack all members block-diagonally."""
    M = len(mlp_params_raw)
    assert M <= OUT_PAD
    MH = M * max_hidden
    f_total = n_cont_total + n_embs
    f_pad = _round_up(f_total, 8)

    W1 = np.zeros((f_pad, MH), np.float32)
    B1 = np.zeros((1, MH), np.float32)
    W2 = np.zeros((MH, MH), np.float32)
    B2 = np.zeros((1, MH), np.float32)
    W3 = np.zeros((MH, MH), np.float32)
    B3 = np.zeros((1, MH), np.float32)
    W4 = np.zeros((MH, OUT_PAD), np.float32)
    B4 = np.zeros((1, OUT_PAD), np.float32)

    emb_rows = list(range(n_cont_total, n_cont_total + n_embs))
    for m, (raw, cols) in enumerate(zip(mlp_params_raw, input_dims)):
        (w1, b1, s1, t1, w2, b2, s2, t2, w3, b3, s3, t3, w4, b4) = \
            [np.asarray(a, np.float32) for a in raw]
        # Exact eval-mode BN fold into the FOLLOWING Linear:
        #   (z*s + t) @ W + b = z @ (s^T * W) + (t @ W + b)
        w2f, b2f = w2 * s1.T, t1 @ w2 + b2
        w3f, b3f = w3 * s2.T, t2 @ w3 + b3
        w4f, b4f = w4 * s3.T, t3 @ w4 + b4

        hm = w1.shape[1]
        off = m * max_hidden
        # Column selection is linear: sel (f_pad, in_dim_m) with one 1 per member
        # input feature; sel @ w1 maps shared feature rows -> member's W1 rows.
        member_rows = list(cols) + emb_rows
        sel = np.zeros((f_pad, len(member_rows)), np.float32)
        sel[np.asarray(member_rows), np.arange(len(member_rows))] = 1.0

        W1[:, off:off + hm] = sel @ w1
        B1[0, off:off + hm] = b1[0]
        W2[off:off + hm, off:off + hm] = w2f
        B2[0, off:off + hm] = b2f[0]
        W3[off:off + hm, off:off + hm] = w3f
        B3[0, off:off + hm] = b3f[0]
        W4[off:off + hm, m] = w4f[:, 0]          # member m's head -> output column m
        B4[0, m] = b4f[0, 0]

    stacked = tuple(jnp.asarray(a) for a in (W1, B1, W2, B2, W3, B3, W4, B4))
    return stacked, f_pad


# --------------------------------- forward pass ----------------------------------

def ensemble_forward(cont_data, cat_data, combined_emb, emb_row_offsets,
                     stacked_params, *, n_models, f_pad):
    """Reproduces Ensemble_Model.forward (eval mode): returns (B, n_models, 1) f32."""
    B = cont_data.shape[0]
    n_cat = cat_data.shape[1]
    # encode_and_combine_data: single gather over the block-diag combined table.
    idx = (cat_data + emb_row_offsets[None, :]).reshape(-1)
    xcat = jnp.take(combined_emb, idx, axis=0).reshape(B, n_cat, -1).sum(axis=1)
    # Shared feature matrix; each member's column subset is baked into its W1.
    x = jnp.concatenate([cont_data, xcat], axis=1)
    x = jnp.pad(x, ((0, 0), (0, f_pad - x.shape[1])))
    out = run_ensemble_mlp(x, stacked_params)              # (B, OUT_PAD)
    return out[:, :n_models, None]                          # (B, M, 1)


# --------------------------- pure-JAX reference (for checking) ---------------------------

def reference_forward(cont_data, cat_data, emb_tables, mlp_params_raw, input_dims):
    xcat = jnp.concatenate(
        [jnp.take(t, cat_data[:, k], axis=0) for k, t in enumerate(emb_tables)], axis=1)
    outs = []
    for m, cols in enumerate(input_dims):
        x = jnp.concatenate([cont_data[:, jnp.asarray(cols)], xcat], axis=1)
        (w1, b1, s1, t1, w2, b2, s2, t2, w3, b3, s3, t3, w4, b4) = mlp_params_raw[m]
        h = jnp.maximum(x @ w1 + b1, 0.0) * s1 + t1
        h = jnp.maximum(h @ w2 + b2, 0.0) * s2 + t2
        h = jnp.maximum(h @ w3 + b3, 0.0) * s3 + t3
        outs.append((h @ w4 + b4)[None])
    return jnp.transpose(jnp.concatenate(outs, axis=0), (1, 0, 2))


if __name__ == "__main__":
    key = jax.random.PRNGKey(0)
    k_params, k_cont, k_cat = jax.random.split(key, 3)

    # Small, module-consistent config.
    B = 8                                    # batch
    n_cont_total = 16                        # total continuous features
    emb_dims = [(5, 4), (7, 3), (4, 2)]      # (cardinality, emb_dim) per cat column
    input_dims = [tuple(range(0, 10)),       # continuous column subsets per model
                  tuple(range(4, 16))]
    number_of_dims = [len(idx) for idx in input_dims]
    hidden_dims = [32, 16]                   # one MLP_Model ('Simple_MLP') per entry
    n_embs = sum(d for _, d in emb_dims)
    max_hidden = max(hidden_dims)
    M = len(hidden_dims)

    emb_tables, mlp_params_raw = init_ensemble_params(
        k_params, emb_dims, number_of_dims, hidden_dims, out_dim=1)
    combined_emb, emb_row_offsets = build_combined_embedding(emb_tables)
    stacked_params, f_pad = build_stacked_params(
        mlp_params_raw, input_dims, n_cont_total, n_embs, max_hidden)

    cont_data = jax.random.normal(k_cont, (B, n_cont_total), jnp.float32)
    cat_keys = jax.random.split(k_cat, len(emb_dims))
    cat_data = jnp.stack(
        [jax.random.randint(ck, (B,), 0, card) for ck, (card, _) in zip(cat_keys, emb_dims)],
        axis=1).astype(jnp.int32)            # (B, n_cat)

    forward = jax.jit(functools.partial(
        ensemble_forward, n_models=M, f_pad=f_pad))

    out = forward(cont_data, cat_data, combined_emb, emb_row_offsets, stacked_params)
    out = jax.block_until_ready(out)
    assert out.shape == (B, M, 1), out.shape
    assert out.dtype == jnp.float32

    ref = reference_forward(cont_data, cat_data, emb_tables, mlp_params_raw, input_dims)
    max_err = float(jnp.max(jnp.abs(out - ref)))
    assert max_err < 2e-3, f"mismatch vs reference: {max_err}"

    print("KERNEL_OK")
</pallas_src>

<mosaic_0001>
module attributes {stable_mosaic.version = 11 : i64} {
  func.func @fused_ensemble_kernel(%arg0: i32, %arg1: memref<8x32xf32, #tpu.memory_space<vmem>>, %arg2: memref<32x64xf32, #tpu.memory_space<vmem>>, %arg3: memref<1x64xf32, #tpu.memory_space<vmem>>, %arg4: memref<64x64xf32, #tpu.memory_space<vmem>>, %arg5: memref<1x64xf32, #tpu.memory_space<vmem>>, %arg6: memref<64x64xf32, #tpu.memory_space<vmem>>, %arg7: memref<1x64xf32, #tpu.memory_space<vmem>>, %arg8: memref<64x128xf32, #tpu.memory_space<vmem>>, %arg9: memref<1x128xf32, #tpu.memory_space<vmem>>, %arg10: memref<8x128xf32, #tpu.memory_space<vmem>>) attributes {dimension_semantics = [#tpu.dimension_semantics<arbitrary>], iteration_bounds = array<i64: 1>, scalar_prefetch = 0 : i64, scratch_operands = 0 : i64, tpu.core_type = #tpu.core_type<tc>, window_params = [{transform_indices = @transform_0, window_bounds = array<i64: 8, 32>}, {pipeline_mode = #tpu.pipeline_mode<synchronous>, transform_indices = @transform_1, window_bounds = array<i64: 32, 64>}, {pipeline_mode = #tpu.pipeline_mode<synchronous>, transform_indices = @transform_2, window_bounds = array<i64: 1, 64>}, {pipeline_mode = #tpu.pipeline_mode<synchronous>, transform_indices = @transform_3, window_bounds = array<i64: 64, 64>}, {pipeline_mode = #tpu.pipeline_mode<synchronous>, transform_indices = @transform_4, window_bounds = array<i64: 1, 64>}, {pipeline_mode = #tpu.pipeline_mode<synchronous>, transform_indices = @transform_5, window_bounds = array<i64: 64, 64>}, {pipeline_mode = #tpu.pipeline_mode<synchronous>, transform_indices = @transform_6, window_bounds = array<i64: 1, 64>}, {pipeline_mode = #tpu.pipeline_mode<synchronous>, transform_indices = @transform_7, window_bounds = array<i64: 64, 128>}, {pipeline_mode = #tpu.pipeline_mode<synchronous>, transform_indices = @transform_8, window_bounds = array<i64: 1, 128>}, {transform_indices = @transform_9, window_bounds = array<i64: 8, 128>}]} {
    %c0 = arith.constant 0 : index
    %c0_0 = arith.constant 0 : index
    %0 = vector.load %arg1[%c0, %c0_0] : memref<8x32xf32, #tpu.memory_space<vmem>>, vector<8x32xf32>
    %c0_1 = arith.constant 0 : index
    %c0_2 = arith.constant 0 : index
    %1 = vector.load %arg2[%c0_1, %c0_2] : memref<32x64xf32, #tpu.memory_space<vmem>>, vector<32x64xf32>
    %cst = arith.constant dense<0.000000e+00> : vector<8x64xf32>
    %2 = tpu.matmul %0, %1, %cst {dimension_numbers = #tpu.dot_dimension_numbers<[1], [0], [0], [1], [0, 0, 1, 1], [], []>} : vector<8x32xf32>, vector<32x64xf32>, vector<8x64xf32> -> vector<8x64xf32>
    %c0_3 = arith.constant 0 : index
    %c0_4 = arith.constant 0 : index
    %3 = vector.load %arg3[%c0_3, %c0_4] : memref<1x64xf32, #tpu.memory_space<vmem>>, vector<1x64xf32>
    %4 = vector.broadcast %3 : vector<1x64xf32> to vector<8x64xf32>
    %5 = arith.addf %2, %4 : vector<8x64xf32>
    %cst_5 = arith.constant 0.000000e+00 : f32
    %6 = vector.broadcast %cst_5 : f32 to vector<8x64xf32>
    %7 = arith.maximumf %5, %6 : vector<8x64xf32>
    %c0_6 = arith.constant 0 : index
    %c0_7 = arith.constant 0 : index
    %8 = vector.load %arg4[%c0_6, %c0_7] : memref<64x64xf32, #tpu.memory_space<vmem>>, vector<64x64xf32>
    %cst_8 = arith.constant dense<0.000000e+00> : vector<8x64xf32>
    %9 = tpu.matmul %7, %8, %cst_8 {dimension_numbers = #tpu.dot_dimension_numbers<[1], [0], [0], [1], [0, 0, 1, 1], [], []>} : vector<8x64xf32>, vector<64x64xf32>, vector<8x64xf32> -> vector<8x64xf32>
    %c0_9 = arith.constant 0 : index
    %c0_10 = arith.constant 0 : index
    %10 = vector.load %arg5[%c0_9, %c0_10] : memref<1x64xf32, #tpu.memory_space<vmem>>, vector<1x64xf32>
    %11 = vector.broadcast %10 : vector<1x64xf32> to vector<8x64xf32>
    %12 = arith.addf %9, %11 : vector<8x64xf32>
    %cst_11 = arith.constant 0.000000e+00 : f32
    %13 = vector.broadcast %cst_11 : f32 to vector<8x64xf32>
    %14 = arith.maximumf %12, %13 : vector<8x64xf32>
    %c0_12 = arith.constant 0 : index
    %c0_13 = arith.constant 0 : index
    %15 = vector.load %arg6[%c0_12, %c0_13] : memref<64x64xf32, #tpu.memory_space<vmem>>, vector<64x64xf32>
    %cst_14 = arith.constant dense<0.000000e+00> : vector<8x64xf32>
    %16 = tpu.matmul %14, %15, %cst_14 {dimension_numbers = #tpu.dot_dimension_numbers<[1], [0], [0], [1], [0, 0, 1, 1], [], []>} : vector<8x64xf32>, vector<64x64xf32>, vector<8x64xf32> -> vector<8x64xf32>
    %c0_15 = arith.constant 0 : index
    %c0_16 = arith.constant 0 : index
    %17 = vector.load %arg7[%c0_15, %c0_16] : memref<1x64xf32, #tpu.memory_space<vmem>>, vector<1x64xf32>
    %18 = vector.broadcast %17 : vector<1x64xf32> to vector<8x64xf32>
    %19 = arith.addf %16, %18 : vector<8x64xf32>
    %cst_17 = arith.constant 0.000000e+00 : f32
    %20 = vector.broadcast %cst_17 : f32 to vector<8x64xf32>
    %21 = arith.maximumf %19, %20 : vector<8x64xf32>
    %c0_18 = arith.constant 0 : index
    %c0_19 = arith.constant 0 : index
    %22 = vector.load %arg8[%c0_18, %c0_19] : memref<64x128xf32, #tpu.memory_space<vmem>>, vector<64x128xf32>
    %cst_20 = arith.constant dense<0.000000e+00> : vector<8x128xf32>
    %23 = tpu.matmul %21, %22, %cst_20 {dimension_numbers = #tpu.dot_dimension_numbers<[1], [0], [0], [1], [0, 0, 1, 1], [], []>} : vector<8x64xf32>, vector<64x128xf32>, vector<8x128xf32> -> vector<8x128xf32>
    %c0_21 = arith.constant 0 : index
    %c0_22 = arith.constant 0 : index
    %24 = vector.load %arg9[%c0_21, %c0_22] : memref<1x128xf32, #tpu.memory_space<vmem>>, vector<1x128xf32>
    %25 = vector.broadcast %24 : vector<1x128xf32> to vector<8x128xf32>
    %26 = arith.addf %23, %25 : vector<8x128xf32>
    %c0_23 = arith.constant 0 : index
    %c0_24 = arith.constant 0 : index
    %27 = vector.load %arg10[%c0_23, %c0_24] : memref<8x128xf32, #tpu.memory_space<vmem>>, vector<8x128xf32>
    tpu.vector_store %arg10[%c0_23, %c0_24], %26 {strides = array<i32>} : memref<8x128xf32, #tpu.memory_space<vmem>>, vector<8x128xf32>,
    return
  }
  func.func @transform_0(%arg0: i32) -> (i32, i32) {
    %c0_i32 = arith.constant 0 : i32
    %c0_i32_0 = arith.constant 0 : i32
    return %arg0, %c0_i32 : i32, i32
  }
  func.func @transform_1(%arg0: i32) -> (i32, i32) {
    %c0_i32 = arith.constant 0 : i32
    %c0_i32_0 = arith.constant 0 : i32
    %c0_i32_1 = arith.constant 0 : i32
    return %c0_i32, %c0_i32_0 : i32, i32
  }
  func.func @transform_2(%arg0: i32) -> (i32, i32) {
    %c0_i32 = arith.constant 0 : i32
    %c0_i32_0 = arith.constant 0 : i32
    %c0_i32_1 = arith.constant 0 : i32
    return %c0_i32, %c0_i32_0 : i32, i32
  }
  func.func @transform_3(%arg0: i32) -> (i32, i32) {
    %c0_i32 = arith.constant 0 : i32
    %c0_i32_0 = arith.constant 0 : i32
    %c0_i32_1 = arith.constant 0 : i32
    return %c0_i32, %c0_i32_0 : i32, i32
  }
  func.func @transform_4(%arg0: i32) -> (i32, i32) {
    %c0_i32 = arith.constant 0 : i32
    %c0_i32_0 = arith.constant 0 : i32
    %c0_i32_1 = arith.constant 0 : i32
    return %c0_i32, %c0_i32_0 : i32, i32
  }
  func.func @transform_5(%arg0: i32) -> (i32, i32) {
    %c0_i32 = arith.constant 0 : i32
    %c0_i32_0 = arith.constant 0 : i32
    %c0_i32_1 = arith.constant 0 : i32
    return %c0_i32, %c0_i32_0 : i32, i32
  }
  func.func @transform_6(%arg0: i32) -> (i32, i32) {
    %c0_i32 = arith.constant 0 : i32
    %c0_i32_0 = arith.constant 0 : i32
    %c0_i32_1 = arith.constant 0 : i32
    return %c0_i32, %c0_i32_0 : i32, i32
  }
  func.func @transform_7(%arg0: i32) -> (i32, i32) {
    %c0_i32 = arith.constant 0 : i32
    %c0_i32_0 = arith.constant 0 : i32
    %c0_i32_1 = arith.constant 0 : i32
    return %c0_i32, %c0_i32_0 : i32, i32
  }
  func.func @transform_8(%arg0: i32) -> (i32, i32) {
    %c0_i32 = arith.constant 0 : i32
    %c0_i32_0 = arith.constant 0 : i32
    %c0_i32_1 = arith.constant 0 : i32
    return %c0_i32, %c0_i32_0 : i32, i32
  }
  func.func @transform_9(%arg0: i32) -> (i32, i32) {
    %c0_i32 = arith.constant 0 : i32
    %c0_i32_0 = arith.constant 0 : i32
    return %arg0, %c0_i32 : i32, i32
  }
}

</mosaic_0001>

<llo_original>
// kernel: ensemble_forward.1
$region0: #{ensemble_forward.1}
  #allocation0 [shape = 'u32[]', space=smem, size = 0x4, offset = 0x4, fixed_abs, tag = 'smem constant byte address 0x4 - core index']
  #allocation1 [shape = 'u32[144,128]{1,0:T(1,128)}', space=vmem, size = 0x12000, scoped, tag = 'internal scratch']
  %s0 = inlined_call_operand.vmem [shape: f32[8,32], index: 0, kind: input, shape index: {}]
  %s1 = inlined_call_operand.vmem [shape: f32[32,64], index: 1, kind: input, shape index: {}]
  %s2 = inlined_call_operand.vmem [shape: f32[1,64], index: 2, kind: input, shape index: {}]
  %s3 = inlined_call_operand.vmem [shape: f32[64,64], index: 3, kind: input, shape index: {}]
  %s4 = inlined_call_operand.vmem [shape: f32[1,64], index: 4, kind: input, shape index: {}]
  %s5 = inlined_call_operand.vmem [shape: f32[64,64], index: 5, kind: input, shape index: {}]
  %s6 = inlined_call_operand.vmem [shape: f32[1,64], index: 6, kind: input, shape index: {}]
  %s7 = inlined_call_operand.vmem [shape: f32[64,128], index: 7, kind: input, shape index: {}]
  %s8 = inlined_call_operand.vmem [shape: f32[1,128], index: 8, kind: input, shape index: {}]
  %s9 = inlined_call_operand.vmem [shape: f32[8,128], index: 9, kind: output, shape index: {}]
  %s10 = sld [smem:[#allocation0]]
  $region46: #{ensemble_forward.1} parent=0
    _
  %s12 = ssub.s32 1, %s10
  %s13 = scalar_select 0, %s12, %s10
  // Predicated region
  $region2: #{ensemble_forward.1} parent=0 // pred_check
    _
  $region3: #{ensemble_forward.1} parent=0 // pred_check_branch
    %15 = sbr.rel (0) target = $region5
  $region4: #{ensemble_forward.1} parent=0 // pred_region
    _
  $region5: #{ensemble_forward.1} parent=0 // pred_fallthru
    _
  // Predicated region
  $region6: #{ensemble_forward.1} parent=0 // pred_check
    _
  $region7: #{ensemble_forward.1} parent=0 // pred_check_branch
    %17 = sbr.rel (0) target = $region9
  $region8: #{ensemble_forward.1} parent=0 // pred_region
    _
  $region9: #{ensemble_forward.1} parent=0 // pred_fallthru
    _
  // Predicated region
  $region10: #{ensemble_forward.1} parent=0 // pred_check
    _
  $region11: #{ensemble_forward.1} parent=0 // pred_check_branch
    %19 = sbr.rel (0) target = $region13
  $region12: #{ensemble_forward.1} parent=0 // pred_region
    _
  $region13: #{ensemble_forward.1} parent=0 // pred_fallthru
    _
  // Predicated region
  $region14: #{ensemble_forward.1} parent=0 // pred_check
    _
  $region15: #{ensemble_forward.1} parent=0 // pred_check_branch
    %21 = sbr.rel (0) target = $region17
  $region16: #{ensemble_forward.1} parent=0 // pred_region
    _
  $region17: #{ensemble_forward.1} parent=0 // pred_fallthru
    _
  // Predicated region
  $region18: #{ensemble_forward.1} parent=0 // pred_check
    _
  $region19: #{ensemble_forward.1} parent=0 // pred_check_branch
    %23 = sbr.rel (0) target = $region21
  $region20: #{ensemble_forward.1} parent=0 // pred_region
    _
  $region21: #{ensemble_forward.1} parent=0 // pred_fallthru
    _
  // Predicated region
  $region22: #{ensemble_forward.1} parent=0 // pred_check
    _
  $region23: #{ensemble_forward.1} parent=0 // pred_check_branch
    %25 = sbr.rel (0) target = $region25
  $region24: #{ensemble_forward.1} parent=0 // pred_region
    _
  $region25: #{ensemble_forward.1} parent=0 // pred_fallthru
    _
  // Predicated region
  $region26: #{ensemble_forward.1} parent=0 // pred_check
    _
  $region27: #{ensemble_forward.1} parent=0 // pred_check_branch
    %27 = sbr.rel (0) target = $region29
  $region28: #{ensemble_forward.1} parent=0 // pred_region
    _
  $region29: #{ensemble_forward.1} parent=0 // pred_fallthru
    _
  // Predicated region
  $region30: #{ensemble_forward.1} parent=0 // pred_check
    _
  $region31: #{ensemble_forward.1} parent=0 // pred_check_branch
    %29 = sbr.rel (0) target = $region33
  $region32: #{ensemble_forward.1} parent=0 // pred_region
    _
  $region33: #{ensemble_forward.1} parent=0 // pred_fallthru
    _
  // Predicated region
  $region34: #{ensemble_forward.1} parent=0 // pred_check
    _
  $region35: #{ensemble_forward.1} parent=0 // pred_check_branch
    %31 = sbr.rel (0) target = $region37
  $region36: #{ensemble_forward.1} parent=0 // pred_region
    _
  $region37: #{ensemble_forward.1} parent=0 // pred_fallthru
    _
  %v32 = vld [vmem:[%s0] sm:$0xff]
  %v33 = vld [vmem:[%s1] sm:$0xff]
  %v34 = vld [vmem:[%s1 + $0x8] sm:$0xff]
  %v35 = vld [vmem:[%s1 + $0x10] sm:$0xff]
  %v36 = vld [vmem:[%s1 + $0x18] sm:$0xff]
  %v37 = vld [vmem:[%s2] sm:$0x1]
  %v39 = vlaneseq
  %v40 = vshrl.u32 %v39, 7
  %v41 = vsub.s32 0, %v40
  %v42 = vrot.slane %v37, %v41
  %vm44 = vcmask 261120
  %v46 = vsel %vm44, %v32, 0
  %48 = vmatprep.subr.mxu0 0.0
  %49 = vmatpush1.msra.mxu0 0.0
  %50 = vmatprep.subr.mxu0 0.0
  %51 = vmatpush1.msra.mxu0 0.0
  %52 = vmatprep.subr.mxu0 0.0
  %53 = vmatpush1.msra.mxu0 0.0
  %54 = vmatprep.subr.mxu0 0.0
  %55 = vmatpush1.msra.mxu0 0.0
  %56 = vmatprep.subr.mxu0 0.0
  %57 = vmatpush1.msra.mxu0 0.0
  %58 = vmatprep.subr.mxu0 0.0
  %59 = vmatpush1.msra.mxu0 0.0
  %60 = vmatprep.subr.mxu0 0.0
  %61 = vmatpush1.msra.mxu0 0.0
  %62 = vmatprep.subr.mxu0 0.0
  %63 = vmatpush1.msra.mxu0 0.0
  %64 = vmatprep.subr.mxu0 0.0
  %65 = vmatpush1.msra.mxu0 0.0
  %66 = vmatprep.subr.mxu0 0.0
  %67 = vmatpush1.msra.mxu0 0.0
  %68 = vmatprep.subr.mxu0 0.0
  %69 = vmatpush1.msra.mxu0 0.0
  %70 = vmatprep.subr.mxu0 0.0
  %71 = vmatpush1.msra.mxu0 0.0
  %72 = vmatprep.subr.mxu0 0.0
  %73 = vmatpush1.msra.mxu0 %v36
  %74 = vmatprep.subr.mxu0 0.0
  %75 = vmatpush1.msra.mxu0 %v35
  %76 = vmatprep.subr.mxu0 0.0
  %77 = vmatpush1.msra.mxu0 %v34
  %78 = vmatprep.subr.mxu0 0.0
  %79 = vmatpush1.msra.mxu0 %v33
  %80 = vmatprep.subr.mxu0 0.0
  %81 = vmatpush2.msra.mxu0 0.0
  %82 = vmatprep.subr.mxu0 0.0
  %83 = vmatpush2.msra.mxu0 0.0
  %84 = vmatprep.subr.mxu0 0.0
  %85 = vmatpush2.msra.mxu0 0.0
  %86 = vmatprep.subr.mxu0 0.0
  %87 = vmatpush2.msra.mxu0 0.0
  %88 = vmatprep.subr.mxu0 0.0
  %89 = vmatpush2.msra.mxu0 0.0
  %90 = vmatprep.subr.mxu0 0.0
  %91 = vmatpush2.msra.mxu0 0.0
  %92 = vmatprep.subr.mxu0 0.0
  %93 = vmatpush2.msra.mxu0 0.0
  %94 = vmatprep.subr.mxu0 0.0
  %95 = vmatpush2.msra.mxu0 0.0
  %96 = vmatprep.subr.mxu0 0.0
  %97 = vmatpush2.msra.mxu0 0.0
  %98 = vmatprep.subr.mxu0 0.0
  %99 = vmatpush2.msra.mxu0 0.0
  %100 = vmatprep.subr.mxu0 0.0
  %101 = vmatpush2.msra.mxu0 0.0
  %102 = vmatprep.subr.mxu0 0.0
  %103 = vmatpush2.msra.mxu0 0.0
  %104 = vmatprep.subr.mxu0 0.0
  %105 = vmatpush2.msra.mxu0 0.0
  %106 = vmatprep.subr.mxu0 0.0
  %107 = vmatpush2.msra.mxu0 0.0
  %108 = vmatprep.subr.mxu0 0.0
  %109 = vmatpush2.msra.mxu0 0.0
  %110 = vmatprep.subr.mxu0 0.0
  %111 = vmatpush2.msra.mxu0 0.0
  %112 = vmatprep.mubr.f32.mxu0 0.0
  %113 = vmatmul.mubr.f32.gmra.mxu0 %v46
  %v114 = vpop.f32.mrf.mxu0
  %v115 = vadd.f32 %v42, %v114
  %v116 = vpop.f32.mrf.mxu0
  %117 = vdwg.mxu0
  %v118 = vmax.f32 %v115, 0.0
  %v119 = vld [vmem:[%s3] sm:$0xff]
  %v120 = vld [vmem:[%s3 + $0x8] sm:$0xff]
  %v121 = vld [vmem:[%s3 + $0x10] sm:$0xff]
  %v122 = vld [vmem:[%s3 + $0x18] sm:$0xff]
  %v123 = vld [vmem:[%s3 + $0x20] sm:$0xff]
  %v124 = vld [vmem:[%s3 + $0x28] sm:$0xff]
  %v125 = vld [vmem:[%s3 + $0x30] sm:$0xff]
  %v126 = vld [vmem:[%s3 + $0x38] sm:$0xff]
  %v127 = vld [vmem:[%s4] sm:$0x1]
  %v129 = vlaneseq
  %v130 = vshrl.u32 %v129, 7
  %v131 = vsub.s32 0, %v130
  %v132 = vrot.slane %v127, %v131
  %vm134 = vcmask 523264
  %v136 = vsel %vm134, %v118, 0
  %138 = vmatprep.subr.mxu0 0.0
  %139 = vmatpush1.msra.mxu0 0.0
  %140 = vmatprep.subr.mxu0 0.0
  %141 = vmatpush1.msra.mxu0 0.0
  %142 = vmatprep.subr.mxu0 0.0
  %143 = vmatpush1.msra.mxu0 0.0
  %144 = vmatprep.subr.mxu0 0.0
  %145 = vmatpush1.msra.mxu0 0.0
  %146 = vmatprep.subr.mxu0 0.0
  %147 = vmatpush1.msra.mxu0 0.0
  %148 = vmatprep.subr.mxu0 0.0
  %149 = vmatpush1.msra.mxu0 0.0
  %150 = vmatprep.subr.mxu0 0.0
  %151 = vmatpush1.msra.mxu0 0.0
  %152 = vmatprep.subr.mxu0 0.0
  %153 = vmatpush1.msra.mxu0 0.0
  %154 = vmatprep.subr.mxu0 0.0
  %155 = vmatpush1.msra.mxu0 %v126
  %156 = vmatprep.subr.mxu0 0.0
  %157 = vmatpush1.msra.mxu0 %v125
  %158 = vmatprep.subr.mxu0 0.0
  %159 = vmatpush1.msra.mxu0 %v124
  %160 = vmatprep.subr.mxu0 0.0
  %161 = vmatpush1.msra.mxu0 %v123
  %162 = vmatprep.subr.mxu0 0.0
  %163 = vmatpush1.msra.mxu0 %v122
  %164 = vmatprep.subr.mxu0 0.0
  %165 = vmatpush1.msra.mxu0 %v121
  %166 = vmatprep.subr.mxu0 0.0
  %167 = vmatpush1.msra.mxu0 %v120
  %168 = vmatprep.subr.mxu0 0.0
  %169 = vmatpush1.msra.mxu0 %v119
  %170 = vmatprep.subr.mxu0 0.0
  %171 = vmatpush2.msra.mxu0 0.0
  %172 = vmatprep.subr.mxu0 0.0
  %173 = vmatpush2.msra.mxu0 0.0
  %174 = vmatprep.subr.mxu0 0.0
  %175 = vmatpush2.msra.mxu0 0.0
  %176 = vmatprep.subr.mxu0 0.0
  %177 = vmatpush2.msra.mxu0 0.0
  %178 = vmatprep.subr.mxu0 0.0
  %179 = vmatpush2.msra.mxu0 0.0
  %180 = vmatprep.subr.mxu0 0.0
  %181 = vmatpush2.msra.mxu0 0.0
  %182 = vmatprep.subr.mxu0 0.0
  %183 = vmatpush2.msra.mxu0 0.0
  %184 = vmatprep.subr.mxu0 0.0
  %185 = vmatpush2.msra.mxu0 0.0
  %186 = vmatprep.subr.mxu0 0.0
  %187 = vmatpush2.msra.mxu0 0.0
  %188 = vmatprep.subr.mxu0 0.0
  %189 = vmatpush2.msra.mxu0 0.0
  %190 = vmatprep.subr.mxu0 0.0
  %191 = vmatpush2.msra.mxu0 0.0
  %192 = vmatprep.subr.mxu0 0.0
  %193 = vmatpush2.msra.mxu0 0.0
  %194 = vmatprep.subr.mxu0 0.0
  %195 = vmatpush2.msra.mxu0 0.0
  %196 = vmatprep.subr.mxu0 0.0
  %197 = vmatpush2.msra.mxu0 0.0
  %198 = vmatprep.subr.mxu0 0.0
  %199 = vmatpush2.msra.mxu0 0.0
  %200 = vmatprep.subr.mxu0 0.0
  %201 = vmatpush2.msra.mxu0 0.0
  %202 = vmatprep.mubr.f32.mxu0 0.0
  %203 = vmatmul.mubr.f32.gmra.mxu0 %v136
  %v204 = vpop.f32.mrf.mxu0
  %v205 = vadd.f32 %v132, %v204
  %v206 = vpop.f32.mrf.mxu0
  %207 = vdwg.mxu0
  %v208 = vmax.f32 %v205, 0.0
  %v209 = vld [vmem:[%s5] sm:$0xff]
  %v210 = vld [vmem:[%s5 + $0x8] sm:$0xff]
  %v211 = vld [vmem:[%s5 + $0x10] sm:$0xff]
  %v212 = vld [vmem:[%s5 + $0x18] sm:$0xff]
  %v213 = vld [vmem:[%s5 + $0x20] sm:$0xff]
  %v214 = vld [vmem:[%s5 + $0x28] sm:$0xff]
  %v215 = vld [vmem:[%s5 + $0x30] sm:$0xff]
  %v216 = vld [vmem:[%s5 + $0x38] sm:$0xff]
  %v217 = vld [vmem:[%s6] sm:$0x1]
  %v219 = vlaneseq
  %v220 = vshrl.u32 %v219, 7
  %v221 = vsub.s32 0, %v220
  %v222 = vrot.slane %v217, %v221
  %v225 = vsel %vm134, %v208, 0
  %227 = vmatprep.subr.mxu0 0.0
  %228 = vmatpush1.msra.mxu0 0.0
  %229 = vmatprep.subr.mxu0 0.0
  %230 = vmatpush1.msra.mxu0 0.0
  %231 = vmatprep.subr.mxu0 0.0
  %232 = vmatpush1.msra.mxu0 0.0
  %233 = vmatprep.subr.mxu0 0.0
  %234 = vmatpush1.msra.mxu0 0.0
  %235 = vmatprep.subr.mxu0 0.0
  %236 = vmatpush1.msra.mxu0 0.0
  %237 = vmatprep.subr.mxu0 0.0
  %238 = vmatpush1.msra.mxu0 0.0
  %239 = vmatprep.subr.mxu0 0.0
  %240 = vmatpush1.msra.mxu0 0.0
  %241 = vmatprep.subr.mxu0 0.0
  %242 = vmatpush1.msra.mxu0 0.0
  %243 = vmatprep.subr.mxu0 0.0
  %244 = vmatpush1.msra.mxu0 %v216
  %245 = vmatprep.subr.mxu0 0.0
  %246 = vmatpush1.msra.mxu0 %v215
  %247 = vmatprep.subr.mxu0 0.0
  %248 = vmatpush1.msra.mxu0 %v214
  %249 = vmatprep.subr.mxu0 0.0
  %250 = vmatpush1.msra.mxu0 %v213
  %251 = vmatprep.subr.mxu0 0.0
  %252 = vmatpush1.msra.mxu0 %v212
  %253 = vmatprep.subr.mxu0 0.0
  %254 = vmatpush1.msra.mxu0 %v211
  %255 = vmatprep.subr.mxu0 0.0
  %256 = vmatpush1.msra.mxu0 %v210
  %257 = vmatprep.subr.mxu0 0.0
  %258 = vmatpush1.msra.mxu0 %v209
  %259 = vmatprep.subr.mxu0 0.0
  %260 = vmatpush2.msra.mxu0 0.0
  %261 = vmatprep.subr.mxu0 0.0
  %262 = vmatpush2.msra.mxu0 0.0
  %263 = vmatprep.subr.mxu0 0.0
  %264 = vmatpush2.msra.mxu0 0.0
  %265 = vmatprep.subr.mxu0 0.0
  %266 = vmatpush2.msra.mxu0 0.0
  %267 = vmatprep.subr.mxu0 0.0
  %268 = vmatpush2.msra.mxu0 0.0
  %269 = vmatprep.subr.mxu0 0.0
  %270 = vmatpush2.msra.mxu0 0.0
  %271 = vmatprep.subr.mxu0 0.0
  %272 = vmatpush2.msra.mxu0 0.0
  %273 = vmatprep.subr.mxu0 0.0
  %274 = vmatpush2.msra.mxu0 0.0
  %275 = vmatprep.subr.mxu0 0.0
  %276 = vmatpush2.msra.mxu0 0.0
  %277 = vmatprep.subr.mxu0 0.0
  %278 = vmatpush2.msra.mxu0 0.0
  %279 = vmatprep.subr.mxu0 0.0
  %280 = vmatpush2.msra.mxu0 0.0
  %281 = vmatprep.subr.mxu0 0.0
  %282 = vmatpush2.msra.mxu0 0.0
  %283 = vmatprep.subr.mxu0 0.0
  %284 = vmatpush2.msra.mxu0 0.0
  %285 = vmatprep.subr.mxu0 0.0
  %286 = vmatpush2.msra.mxu0 0.0
  %287 = vmatprep.subr.mxu0 0.0
  %288 = vmatpush2.msra.mxu0 0.0
  %289 = vmatprep.subr.mxu0 0.0
  %290 = vmatpush2.msra.mxu0 0.0
  %291 = vmatprep.mubr.f32.mxu0 0.0
  %292 = vmatmul.mubr.f32.gmra.mxu0 %v225
  %v293 = vpop.f32.mrf.mxu0
  %v294 = vadd.f32 %v222, %v293
  %v295 = vpop.f32.mrf.mxu0
  %296 = vdwg.mxu0
  %v297 = vmax.f32 %v294, 0.0
  %v298 = vld [vmem:[%s7] sm:$0xff]
  %v299 = vld [vmem:[%s7 + $0x8] sm:$0xff]
  %v300 = vld [vmem:[%s7 + $0x10] sm:$0xff]
  %v301 = vld [vmem:[%s7 + $0x18] sm:$0xff]
  %v302 = vld [vmem:[%s7 + $0x20] sm:$0xff]
  %v303 = vld [vmem:[%s7 + $0x28] sm:$0xff]
  %v304 = vld [vmem:[%s7 + $0x30] sm:$0xff]
  %v305 = vld [vmem:[%s7 + $0x38] sm:$0xff]
  %v306 = vld [vmem:[%s8] sm:$0x1]
  %v308 = vlaneseq
  %v309 = vshrl.u32 %v308, 7
  %v310 = vsub.s32 0, %v309
  %v311 = vrot.slane %v306, %v310
  %v314 = vsel %vm134, %v297, 0
  %316 = vmatprep.subr.mxu0 0.0
  %317 = vmatpush1.msra.mxu0 0.0
  %318 = vmatprep.subr.mxu0 0.0
  %319 = vmatpush1.msra.mxu0 0.0
  %320 = vmatprep.subr.mxu0 0.0
  %321 = vmatpush1.msra.mxu0 0.0
  %322 = vmatprep.subr.mxu0 0.0
  %323 = vmatpush1.msra.mxu0 0.0
  %324 = vmatprep.subr.mxu0 0.0
  %325 = vmatpush1.msra.mxu0 0.0
  %326 = vmatprep.subr.mxu0 0.0
  %327 = vmatpush1.msra.mxu0 0.0
  %328 = vmatprep.subr.mxu0 0.0
  %329 = vmatpush1.msra.mxu0 0.0
  %330 = vmatprep.subr.mxu0 0.0
  %331 = vmatpush1.msra.mxu0 0.0
  %332 = vmatprep.subr.mxu0 0.0
  %333 = vmatpush1.msra.mxu0 %v305
  %334 = vmatprep.subr.mxu0 0.0
  %335 = vmatpush1.msra.mxu0 %v304
  %336 = vmatprep.subr.mxu0 0.0
  %337 = vmatpush1.msra.mxu0 %v303
  %338 = vmatprep.subr.mxu0 0.0
  %339 = vmatpush1.msra.mxu0 %v302
  %340 = vmatprep.subr.mxu0 0.0
  %341 = vmatpush1.msra.mxu0 %v301
  %342 = vmatprep.subr.mxu0 0.0
  %343 = vmatpush1.msra.mxu0 %v300
  %344 = vmatprep.subr.mxu0 0.0
  %345 = vmatpush1.msra.mxu0 %v299
  %346 = vmatprep.subr.mxu0 0.0
  %347 = vmatpush1.msra.mxu0 %v298
  %348 = vmatprep.subr.mxu0 0.0
  %349 = vmatpush2.msra.mxu0 0.0
  %350 = vmatprep.subr.mxu0 0.0
  %351 = vmatpush2.msra.mxu0 0.0
  %352 = vmatprep.subr.mxu0 0.0
  %353 = vmatpush2.msra.mxu0 0.0
  %354 = vmatprep.subr.mxu0 0.0
  %355 = vmatpush2.msra.mxu0 0.0
  %356 = vmatprep.subr.mxu0 0.0
  %357 = vmatpush2.msra.mxu0 0.0
  %358 = vmatprep.subr.mxu0 0.0
  %359 = vmatpush2.msra.mxu0 0.0
  %360 = vmatprep.subr.mxu0 0.0
  %361 = vmatpush2.msra.mxu0 0.0
  %362 = vmatprep.subr.mxu0 0.0
  %363 = vmatpush2.msra.mxu0 0.0
  %364 = vmatprep.subr.mxu0 0.0
  %365 = vmatpush2.msra.mxu0 0.0
  %366 = vmatprep.subr.mxu0 0.0
  %367 = vmatpush2.msra.mxu0 0.0
  %368 = vmatprep.subr.mxu0 0.0
  %369 = vmatpush2.msra.mxu0 0.0
  %370 = vmatprep.subr.mxu0 0.0
  %371 = vmatpush2.msra.mxu0 0.0
  %372 = vmatprep.subr.mxu0 0.0
  %373 = vmatpush2.msra.mxu0 0.0
  %374 = vmatprep.subr.mxu0 0.0
  %375 = vmatpush2.msra.mxu0 0.0
  %376 = vmatprep.subr.mxu0 0.0
  %377 = vmatpush2.msra.mxu0 0.0
  %378 = vmatprep.subr.mxu0 0.0
  %379 = vmatpush2.msra.mxu0 0.0
  %380 = vmatprep.mubr.f32.mxu0 0.0
  %381 = vmatmul.mubr.f32.gmra.mxu0 %v314
  %v382 = vpop.f32.mrf.mxu0
  %v383 = vadd.f32 %v311, %v382
  %v384 = vpop.f32.mrf.mxu0
  %385 = vdwg.mxu0
  %386 = vst [vmem:[%s9] sm:$0xff] %v383
  // Predicated region
  $region38: #{ensemble_forward.1} parent=0 // pred_check
    _
  $region39: #{ensemble_forward.1} parent=0 // pred_check_branch
    %388 = sbr.rel (0) target = $region41
  $region40: #{ensemble_forward.1} parent=0 // pred_region
    _
  $region41: #{ensemble_forward.1} parent=0 // pred_fallthru
    _
  // Predicated region
  $region42: #{ensemble_forward.1} parent=0 // pred_check
    _
  $region43: #{ensemble_forward.1} parent=0 // pred_check_branch
    %390 = sbr.rel (0) target = $region45
  $region44: #{ensemble_forward.1} parent=0 // pred_region
    _
  $region45: #{ensemble_forward.1} parent=0 // pred_fallthru
    _

</llo_original>
